<compile_context>
chip_gen: v7x
topology: tpu7x:2x2x1
jax: 0.10.0
libtpu: 0.0.40
codegen_flags: <defaults>
</compile_context>

<pallas_src>
import functools

import jax
import jax.numpy as jnp
from jax.experimental import pallas as pl
from jax.experimental.pallas import tpu as pltpu


def _round_up(x: int, m: int) -> int:
    return ((x + m - 1) // m) * m


def _cdiv(a: int, b: int) -> int:
    return -(-a // b)


def _id_head_kernel(st_ref, stp1_ref, w1_ref, b1_ref, w2_ref, b2_ref,
                    w3_ref, b3_ref, o_ref):
    """Fused 3-layer MLP on one (TM, ...) batch tile.

    Layer 1 concatenates the two input tiles in VMEM and runs a single
    (TM, 2*obs) @ (2*obs, H) matmul.  Matmuls run on the MXU in the weights'
    dtype (f32 or bf16) with f32 accumulation; bias adds and ReLU stay in f32.
    """
    wdt = w1_ref.dtype
    # VMEM-level concat of the two activation tiles (XLU only; no HBM concat).
    x = jnp.concatenate([st_ref[...], stp1_ref[...]], axis=-1).astype(wdt)

    h1 = jnp.dot(x, w1_ref[...], preferred_element_type=jnp.float32)
    h1 = jnp.maximum(h1 + b1_ref[...], 0.0)

    h2 = jnp.dot(h1.astype(wdt), w2_ref[...], preferred_element_type=jnp.float32)
    h2 = jnp.maximum(h2 + b2_ref[...], 0.0)

    out = jnp.dot(h2.astype(wdt), w3_ref[...], preferred_element_type=jnp.float32)
    o_ref[...] = (out + b3_ref[...]).astype(o_ref.dtype)


def prepare_params(params, compute_dtype=jnp.float32):
    """One-time parameter prep (call OUTSIDE the per-step jit).

    Casts the matmul weights to `compute_dtype` (bf16 roughly doubles MXU rate
    and halves weight bytes on v5e/v6e/v7x) and keeps the biases as f32 row
    vectors for the VPU epilogue, so no per-call weight casting/padding is
    scheduled around the pallas_call.
    """
    cd = jnp.dtype(compute_dtype)
    out = {k: jnp.asarray(params[k], cd) for k in ("w1", "w2", "w3")}
    out.update({k: jnp.asarray(params[k], jnp.float32).reshape(1, -1)
                for k in ("b1", "b2", "b3")})
    return out


def _choose_tm(batch: int, tm: int) -> int:
    """Pick the batch-tile size.

    Multiple of 16 (bf16 sublane packing); for batch >= 32 the tile is clamped
    so the grid has >= 2 steps (v7x megacore sharding via "parallel"); tiny
    batches get a single exact block (block dim == full dim is always legal).
    """
    if batch >= 32:
        tm = min(tm, _round_up(_cdiv(batch, 2), 16))
    tm_eff = max(16, _round_up(tm, 16))
    if tm_eff >= batch:
        return batch            # one exact block covering the whole batch
    return tm_eff


def _mlp_jax(s_t, s_tp1, w1, b1, w2, b2, w3, b3):
    """Plain-XLA forward (small-batch fallback and test reference)."""
    cd = w1.dtype
    x = jnp.concatenate([s_t, s_tp1], axis=-1).astype(cd)
    h1 = jnp.maximum(jnp.dot(x, w1, preferred_element_type=jnp.float32) + b1, 0.0)
    h2 = jnp.maximum(
        jnp.dot(h1.astype(cd), w2, preferred_element_type=jnp.float32) + b2, 0.0)
    return jnp.dot(h2.astype(cd), w3, preferred_element_type=jnp.float32) + b3


@functools.partial(jax.jit, static_argnames=("tm", "min_pallas_batch"))
def inverse_dynamics_head(s_t, s_tp1, params, *, tm=None, min_pallas_batch=64):
    """Fused 3-layer MLP head.  Returns (batch, act_dim) float32.

    Compute dtype is taken from the weights: pass raw f32 params, or call
    prepare_params(params, jnp.bfloat16) once for the bf16 MXU path.
    """
    w1, w2, w3 = params["w1"], params["w2"], params["w3"]
    # Biases as f32 row vectors for the epilogue (no-op if already prepared).
    b1 = jnp.asarray(params["b1"], jnp.float32).reshape(1, -1)
    b2 = jnp.asarray(params["b2"], jnp.float32).reshape(1, -1)
    b3 = jnp.asarray(params["b3"], jnp.float32).reshape(1, -1)

    batch, obs_dim = s_t.shape
    two_obs, hidden_dim = w1.shape
    act_dim = w3.shape[1]
    assert two_obs == 2 * obs_dim and s_tp1.shape == s_t.shape

    # Small-batch (acting path) fallback: pallas_call fixed cost > compute.
    if batch < min_pallas_batch:
        return _mlp_jax(s_t, s_tp1, w1, b1, w2, b2, w3, b3)

    cd = jnp.dtype(w1.dtype)
    if tm is None:
        # f32 intermediates at TM=256 would fill the 64-vreg file -> spills.
        tm = 256 if cd == jnp.dtype(jnp.bfloat16) else 128
    tm_eff = _choose_tm(batch, tm)
    grid = (_cdiv(batch, tm_eff),)

    # NOTE: if the last block is partial, its extra input rows contain
    # unspecified data.  That is safe here because every output row depends
    # only on its own input row, and Pallas discards out-of-bounds output rows.
    def row_spec(ncols):
        return pl.BlockSpec((tm_eff, ncols), lambda i: (i, 0))

    def const_spec(arr):
        return pl.BlockSpec(arr.shape, lambda i: (0, 0))   # VMEM-resident

    nbytes = lambda a: a.size * a.dtype.itemsize
    flops = 2 * batch * (two_obs * hidden_dim
                         + hidden_dim * hidden_dim
                         + hidden_dim * act_dim)
    bytes_accessed = (nbytes(s_t) + nbytes(s_tp1)
                      + nbytes(w1) + nbytes(w2) + nbytes(w3)
                      + nbytes(b1) + nbytes(b2) + nbytes(b3)
                      + batch * act_dim * 4)

    # TODO(synk): if hidden_dim is ever raised to >~1536, single-buffer the
    # constant weight specs (pipeline_mode) / set vmem_limit_bytes explicitly
    # to protect v7x's 64 MiB VMEM; irrelevant at hidden_dim=256.
    return pl.pallas_call(
        _id_head_kernel,
        out_shape=jax.ShapeDtypeStruct((batch, act_dim), jnp.float32),
        grid=grid,
        in_specs=[row_spec(obs_dim), row_spec(obs_dim),
                  const_spec(w1), const_spec(b1),
                  const_spec(w2), const_spec(b2),
                  const_spec(w3), const_spec(b3)],
        out_specs=pl.BlockSpec((tm_eff, act_dim), lambda i: (i, 0)),
        compiler_params=pltpu.CompilerParams(dimension_semantics=("parallel",)),
        cost_estimate=pl.CostEstimate(flops=flops, transcendentals=0,
                                      bytes_accessed=bytes_accessed),
    )(s_t, s_tp1, w1, b1, w2, b2, w3, b3)


def init_params(key, obs_dim, act_dim, hidden_dim=256, dtype=jnp.float32):
    """nn.Linear-style init (U[-1/sqrt(fan_in), 1/sqrt(fan_in)]); weights stored
    as (in_features, out_features)."""
    def linear(k, fan_in, fan_out):
        kw, kb = jax.random.split(k)
        bound = 1.0 / float(fan_in) ** 0.5
        w = jax.random.uniform(kw, (fan_in, fan_out), dtype, -bound, bound)
        b = jax.random.uniform(kb, (1, fan_out), dtype, -bound, bound)
        return w, b

    k1, k2, k3 = jax.random.split(key, 3)
    w1, b1 = linear(k1, 2 * obs_dim, hidden_dim)
    w2, b2 = linear(k2, hidden_dim, hidden_dim)
    w3, b3 = linear(k3, hidden_dim, act_dim)
    return {"w1": w1, "b1": b1, "w2": w2, "b2": b2, "w3": w3, "b3": b3}


def _reference(s_t, s_tp1, params):
    """Pure-JAX reference with matching compute dtype (f32 accumulation)."""
    p = prepare_params(params, params["w1"].dtype)
    return _mlp_jax(s_t, s_tp1, p["w1"], p["b1"], p["w2"], p["b2"],
                    p["w3"], p["b3"])


if __name__ == "__main__":
    key = jax.random.PRNGKey(0)
    k_p, k_s, k_sp, k_p2, k_s2, k_sp2 = jax.random.split(key, 6)

    # --- small shapes consistent with the module: batch=2, obs=16, act=8, hidden=32 ---
    batch, obs_dim, act_dim, hidden_dim = 2, 16, 8, 32
    params = init_params(k_p, obs_dim, act_dim, hidden_dim)
    s_t = jax.random.normal(k_s, (batch, obs_dim), jnp.float32)
    s_tp1 = jax.random.normal(k_sp, (batch, obs_dim), jnp.float32)

    # Force the Pallas path even at batch=2 (single exact block).
    out = jax.block_until_ready(
        inverse_dynamics_head(s_t, s_tp1, params, min_pallas_batch=0))
    ref = _reference(s_t, s_tp1, params)
    assert out.shape == (batch, act_dim), out.shape
    assert jnp.allclose(out, ref, atol=1e-4, rtol=1e-4), "f32 mismatch (small)"

    # Default dispatch at this size uses the XLA fallback; must agree as well.
    out_fb = jax.block_until_ready(inverse_dynamics_head(s_t, s_tp1, params))
    assert jnp.allclose(out_fb, ref, atol=1e-4, rtol=1e-4), "fallback mismatch"

    # --- gridded path: non-divisible batch -> multiple tiles + partial last tile ---
    batch2, obs2, act2, hidden2 = 300, 24, 6, 256
    params2 = init_params(k_p2, obs2, act2, hidden2)
    s_t2 = jax.random.normal(k_s2, (batch2, obs2), jnp.float32)
    s_tp12 = jax.random.normal(k_sp2, (batch2, obs2), jnp.float32)

    out2 = jax.block_until_ready(inverse_dynamics_head(s_t2, s_tp12, params2))
    ref2 = _reference(s_t2, s_tp12, params2)
    assert out2.shape == (batch2, act2), out2.shape
    assert jnp.allclose(out2, ref2, atol=1e-4, rtol=1e-4), "f32 mismatch (gridded)"

    # --- bf16 MXU path (v5e/v6e/v7x): bf16 matmuls, f32 accumulate/bias/ReLU ---
    params2_bf16 = prepare_params(params2, jnp.bfloat16)   # one-time prep
    out_bf = jax.block_until_ready(
        inverse_dynamics_head(s_t2, s_tp12, params2_bf16))
    ref_bf = _reference(s_t2, s_tp12, params2_bf16)
    assert out_bf.shape == (batch2, act2), out_bf.shape
    assert jnp.allclose(out_bf, ref_bf, atol=1e-2, rtol=1e-2), "bf16 mismatch"

    print("KERNEL_OK")
</pallas_src>

<mosaic_0001>
module attributes {stable_mosaic.version = 11 : i64} {
  func.func @_id_head_kernel(%arg0: i32, %arg1: memref<2x16xf32, #tpu.memory_space<vmem>>, %arg2: memref<2x16xf32, #tpu.memory_space<vmem>>, %arg3: memref<32x32xf32, #tpu.memory_space<vmem>>, %arg4: memref<1x32xf32, #tpu.memory_space<vmem>>, %arg5: memref<32x32xf32, #tpu.memory_space<vmem>>, %arg6: memref<1x32xf32, #tpu.memory_space<vmem>>, %arg7: memref<32x8xf32, #tpu.memory_space<vmem>>, %arg8: memref<1x8xf32, #tpu.memory_space<vmem>>, %arg9: memref<2x8xf32, #tpu.memory_space<vmem>>) attributes {dimension_semantics = [#tpu.dimension_semantics<parallel>], iteration_bounds = array<i64: 1>, scalar_prefetch = 0 : i64, scratch_operands = 0 : i64, tpu.core_type = #tpu.core_type<tc>, window_params = [{transform_indices = @transform_0, window_bounds = array<i64: 2, 16>}, {transform_indices = @transform_1, window_bounds = array<i64: 2, 16>}, {pipeline_mode = #tpu.pipeline_mode<synchronous>, transform_indices = @transform_2, window_bounds = array<i64: 32, 32>}, {pipeline_mode = #tpu.pipeline_mode<synchronous>, transform_indices = @transform_3, window_bounds = array<i64: 1, 32>}, {pipeline_mode = #tpu.pipeline_mode<synchronous>, transform_indices = @transform_4, window_bounds = array<i64: 32, 32>}, {pipeline_mode = #tpu.pipeline_mode<synchronous>, transform_indices = @transform_5, window_bounds = array<i64: 1, 32>}, {pipeline_mode = #tpu.pipeline_mode<synchronous>, transform_indices = @transform_6, window_bounds = array<i64: 32, 8>}, {pipeline_mode = #tpu.pipeline_mode<synchronous>, transform_indices = @transform_7, window_bounds = array<i64: 1, 8>}, {transform_indices = @transform_8, window_bounds = array<i64: 2, 8>}]} {
    %c0 = arith.constant 0 : index
    %c0_0 = arith.constant 0 : index
    %0 = vector.load %arg1[%c0, %c0_0] : memref<2x16xf32, #tpu.memory_space<vmem>>, vector<2x16xf32>
    %c0_1 = arith.constant 0 : index
    %c0_2 = arith.constant 0 : index
    %1 = vector.load %arg2[%c0_1, %c0_2] : memref<2x16xf32, #tpu.memory_space<vmem>>, vector<2x16xf32>
    %2 = tpu.concatenate %0, %1 in 1 : vector<2x16xf32>, vector<2x16xf32> -> vector<2x32xf32>
    %c0_3 = arith.constant 0 : index
    %c0_4 = arith.constant 0 : index
    %3 = vector.load %arg3[%c0_3, %c0_4] : memref<32x32xf32, #tpu.memory_space<vmem>>, vector<32x32xf32>
    %cst = arith.constant dense<0.000000e+00> : vector<2x32xf32>
    %4 = tpu.matmul %2, %3, %cst {dimension_numbers = #tpu.dot_dimension_numbers<[1], [0], [0], [1], [0, 0, 1, 1], [], []>} : vector<2x32xf32>, vector<32x32xf32>, vector<2x32xf32> -> vector<2x32xf32>
    %c0_5 = arith.constant 0 : index
    %c0_6 = arith.constant 0 : index
    %5 = vector.load %arg4[%c0_5, %c0_6] : memref<1x32xf32, #tpu.memory_space<vmem>>, vector<1x32xf32>
    %6 = vector.broadcast %5 : vector<1x32xf32> to vector<2x32xf32>
    %7 = arith.addf %4, %6 : vector<2x32xf32>
    %cst_7 = arith.constant 0.000000e+00 : f32
    %8 = vector.broadcast %cst_7 : f32 to vector<2x32xf32>
    %9 = arith.maximumf %7, %8 : vector<2x32xf32>
    %c0_8 = arith.constant 0 : index
    %c0_9 = arith.constant 0 : index
    %10 = vector.load %arg5[%c0_8, %c0_9] : memref<32x32xf32, #tpu.memory_space<vmem>>, vector<32x32xf32>
    %cst_10 = arith.constant dense<0.000000e+00> : vector<2x32xf32>
    %11 = tpu.matmul %9, %10, %cst_10 {dimension_numbers = #tpu.dot_dimension_numbers<[1], [0], [0], [1], [0, 0, 1, 1], [], []>} : vector<2x32xf32>, vector<32x32xf32>, vector<2x32xf32> -> vector<2x32xf32>
    %c0_11 = arith.constant 0 : index
    %c0_12 = arith.constant 0 : index
    %12 = vector.load %arg6[%c0_11, %c0_12] : memref<1x32xf32, #tpu.memory_space<vmem>>, vector<1x32xf32>
    %13 = vector.broadcast %12 : vector<1x32xf32> to vector<2x32xf32>
    %14 = arith.addf %11, %13 : vector<2x32xf32>
    %cst_13 = arith.constant 0.000000e+00 : f32
    %15 = vector.broadcast %cst_13 : f32 to vector<2x32xf32>
    %16 = arith.maximumf %14, %15 : vector<2x32xf32>
    %c0_14 = arith.constant 0 : index
    %c0_15 = arith.constant 0 : index
    %17 = vector.load %arg7[%c0_14, %c0_15] : memref<32x8xf32, #tpu.memory_space<vmem>>, vector<32x8xf32>
    %cst_16 = arith.constant dense<0.000000e+00> : vector<2x8xf32>
    %18 = tpu.matmul %16, %17, %cst_16 {dimension_numbers = #tpu.dot_dimension_numbers<[1], [0], [0], [1], [0, 0, 1, 1], [], []>} : vector<2x32xf32>, vector<32x8xf32>, vector<2x8xf32> -> vector<2x8xf32>
    %c0_17 = arith.constant 0 : index
    %c0_18 = arith.constant 0 : index
    %19 = vector.load %arg8[%c0_17, %c0_18] : memref<1x8xf32, #tpu.memory_space<vmem>>, vector<1x8xf32>
    %20 = vector.broadcast %19 : vector<1x8xf32> to vector<2x8xf32>
    %21 = arith.addf %18, %20 : vector<2x8xf32>
    %c0_19 = arith.constant 0 : index
    %c0_20 = arith.constant 0 : index
    %22 = vector.load %arg9[%c0_19, %c0_20] : memref<2x8xf32, #tpu.memory_space<vmem>>, vector<2x8xf32>
    tpu.vector_store %arg9[%c0_19, %c0_20], %21 {strides = array<i32>} : memref<2x8xf32, #tpu.memory_space<vmem>>, vector<2x8xf32>,
    return
  }
  func.func @transform_0(%arg0: i32) -> (i32, i32) {
    %c0_i32 = arith.constant 0 : i32
    %c0_i32_0 = arith.constant 0 : i32
    return %arg0, %c0_i32 : i32, i32
  }
  func.func @transform_1(%arg0: i32) -> (i32, i32) {
    %c0_i32 = arith.constant 0 : i32
    %c0_i32_0 = arith.constant 0 : i32
    return %arg0, %c0_i32 : i32, i32
  }
  func.func @transform_2(%arg0: i32) -> (i32, i32) {
    %c0_i32 = arith.constant 0 : i32
    %c0_i32_0 = arith.constant 0 : i32
    %c0_i32_1 = arith.constant 0 : i32
    return %c0_i32, %c0_i32_0 : i32, i32
  }
  func.func @transform_3(%arg0: i32) -> (i32, i32) {
    %c0_i32 = arith.constant 0 : i32
    %c0_i32_0 = arith.constant 0 : i32
    %c0_i32_1 = arith.constant 0 : i32
    return %c0_i32, %c0_i32_0 : i32, i32
  }
  func.func @transform_4(%arg0: i32) -> (i32, i32) {
    %c0_i32 = arith.constant 0 : i32
    %c0_i32_0 = arith.constant 0 : i32
    %c0_i32_1 = arith.constant 0 : i32
    return %c0_i32, %c0_i32_0 : i32, i32
  }
  func.func @transform_5(%arg0: i32) -> (i32, i32) {
    %c0_i32 = arith.constant 0 : i32
    %c0_i32_0 = arith.constant 0 : i32
    %c0_i32_1 = arith.constant 0 : i32
    return %c0_i32, %c0_i32_0 : i32, i32
  }
  func.func @transform_6(%arg0: i32) -> (i32, i32) {
    %c0_i32 = arith.constant 0 : i32
    %c0_i32_0 = arith.constant 0 : i32
    %c0_i32_1 = arith.constant 0 : i32
    return %c0_i32, %c0_i32_0 : i32, i32
  }
  func.func @transform_7(%arg0: i32) -> (i32, i32) {
    %c0_i32 = arith.constant 0 : i32
    %c0_i32_0 = arith.constant 0 : i32
    %c0_i32_1 = arith.constant 0 : i32
    return %c0_i32, %c0_i32_0 : i32, i32
  }
  func.func @transform_8(%arg0: i32) -> (i32, i32) {
    %c0_i32 = arith.constant 0 : i32
    %c0_i32_0 = arith.constant 0 : i32
    return %arg0, %c0_i32 : i32, i32
  }
}

</mosaic_0001>

<llo_original>
// kernel: inverse_dynamics_head.1
$region0: #{inverse_dynamics_head.1}
  #allocation0 [shape = 'u32[]', space=smem, size = 0x4, offset = 0x4, fixed_abs, tag = 'smem constant byte address 0x4 - core index']
  #allocation1 [shape = 'u32[144,128]{1,0:T(1,128)}', space=vmem, size = 0x12000, scoped, tag = 'internal scratch']
  %s0 = inlined_call_operand.vmem [shape: f32[2,16], index: 0, kind: input, shape index: {}]
  %s1 = inlined_call_operand.vmem [shape: f32[2,16], index: 1, kind: input, shape index: {}]
  %s2 = inlined_call_operand.vmem [shape: f32[32,32], index: 2, kind: input, shape index: {}]
  %s3 = inlined_call_operand.vmem [shape: f32[1,32], index: 3, kind: input, shape index: {}]
  %s4 = inlined_call_operand.hbm [shape: f32[32,32], index: 4, kind: input, shape index: {}]
  %s5 = inlined_call_operand.vmem [shape: f32[1,32], index: 5, kind: input, shape index: {}]
  %s6 = inlined_call_operand.vmem [shape: f32[32,8], index: 6, kind: input, shape index: {}]
  %s7 = inlined_call_operand.vmem [shape: f32[1,8], index: 7, kind: input, shape index: {}]
  %s8 = inlined_call_operand.hbm [shape: f32[2,8], index: 8, kind: output, shape index: {}]
  %s9 = sld [smem:[#allocation0]]
  $region46: #{inverse_dynamics_head.1} parent=0
    _
  %s11 = ssub.s32 1, %s9
  %s12 = scalar_select 0, %s11, %s9
  $region1: #{inverse_dynamics_head.1} parent=0
    #allocation2 [shape = 'u8[16384]{0}', space=vmem, size = 0x4000, scoped, tag = 'input window, operand 4, single buffered']
    #allocation3 [shape = 's32[1]{0}', space=sflag, size = 0x4, scoped, tag = 'scoped memory for inverse_dynamics_head.1']
    #allocation4 [shape = 's32[1]{0}', space=sflag, size = 0x4, scoped, tag = 'scoped memory for inverse_dynamics_head.1']
    #allocation5 [shape = 'u8[1024]{0}', space=vmem, size = 0x400, scoped, tag = 'output window, operand 0, single buffered']
    %13 = vsyncpa [#allocation3], 0
    %14 = vsyncpa [#allocation4], 0
    // Predicated region
    $region2: #{inverse_dynamics_head.1} parent=1 // pred_check
      _
    $region3: #{inverse_dynamics_head.1} parent=1 // pred_check_branch
      %16 = sbr.rel (0) target = $region5
    $region4: #{inverse_dynamics_head.1} parent=1 // pred_region
      _
    $region5: #{inverse_dynamics_head.1} parent=1 // pred_fallthru
      _
    // Predicated region
    $region6: #{inverse_dynamics_head.1} parent=1 // pred_check
      _
    $region7: #{inverse_dynamics_head.1} parent=1 // pred_check_branch
      %18 = sbr.rel (0) target = $region9
    $region8: #{inverse_dynamics_head.1} parent=1 // pred_region
      _
    $region9: #{inverse_dynamics_head.1} parent=1 // pred_fallthru
      _
    // Predicated region
    $region10: #{inverse_dynamics_head.1} parent=1 // pred_check
      _
    $region11: #{inverse_dynamics_head.1} parent=1 // pred_check_branch
      %20 = sbr.rel (0) target = $region13
    $region12: #{inverse_dynamics_head.1} parent=1 // pred_region
      _
    $region13: #{inverse_dynamics_head.1} parent=1 // pred_fallthru
      _
    // Predicated region
    $region14: #{inverse_dynamics_head.1} parent=1 // pred_check
      _
    $region15: #{inverse_dynamics_head.1} parent=1 // pred_check_branch
      %22 = sbr.rel (0) target = $region17
    $region16: #{inverse_dynamics_head.1} parent=1 // pred_region
      _
    $region17: #{inverse_dynamics_head.1} parent=1 // pred_fallthru
      _
    // Predicated region
    $region18: #{inverse_dynamics_head.1} parent=1 // pred_check
      _
    $region19: #{inverse_dynamics_head.1} parent=1 // pred_check_branch
      %24 = sbr.rel (0) target = $region21
    $region20: #{inverse_dynamics_head.1} parent=1 // pred_region
      %s26 = ssub.s32 512, 512
      %27 = vsyncadd [#allocation3], %s26
      %s28 = sshll.u32 [#allocation2], 4
      %s29 = int_to_ptr.vmem [resolvable:$true] %s28
      %34 = dma.hbm_to_vmem [thread:$0]  %s4, 512, %s29, [#allocation3], 128, 128, 8
    $region21: #{inverse_dynamics_head.1} parent=1 // pred_fallthru
      _
    // Predicated region
    $region22: #{inverse_dynamics_head.1} parent=1 // pred_check
      _
    $region23: #{inverse_dynamics_head.1} parent=1 // pred_check_branch
      %36 = sbr.rel (0) target = $region25
    $region24: #{inverse_dynamics_head.1} parent=1 // pred_region
      _
    $region25: #{inverse_dynamics_head.1} parent=1 // pred_fallthru
      _
    // Predicated region
    $region26: #{inverse_dynamics_head.1} parent=1 // pred_check
      _
    $region27: #{inverse_dynamics_head.1} parent=1 // pred_check_branch
      %38 = sbr.rel (0) target = $region29
    $region28: #{inverse_dynamics_head.1} parent=1 // pred_region
      _
    $region29: #{inverse_dynamics_head.1} parent=1 // pred_fallthru
      _
    // Predicated region
    $region30: #{inverse_dynamics_head.1} parent=1 // pred_check
      _
    $region31: #{inverse_dynamics_head.1} parent=1 // pred_check_branch
      %40 = sbr.rel (0) target = $region33
    $region32: #{inverse_dynamics_head.1} parent=1 // pred_region
      _
    $region33: #{inverse_dynamics_head.1} parent=1 // pred_fallthru
      _
    // Predicated region
    $region34: #{inverse_dynamics_head.1} parent=1 // pred_check
      _
    $region35: #{inverse_dynamics_head.1} parent=1 // pred_check_branch
      %42 = sbr.rel (0) target = $region37
    $region36: #{inverse_dynamics_head.1} parent=1 // pred_region
      %43 = dma.done [#allocation3], 512
    $region37: #{inverse_dynamics_head.1} parent=1 // pred_fallthru
      _
    %v44 = vld [vmem:[%s0] sm:$0x3]
    %v45 = vld [vmem:[%s1] sm:$0x3]
    %47 = vrot.lane.b32.xlu0 %v45, 16
    %v48 = vpop.permute.xlu0 %47
    %vm50 = vcmask 130048
    %v51 = vsel %vm50, %v44, %v48
    %v52 = vld [vmem:[%s2] sm:$0xff]
    %v53 = vld [vmem:[%s2 + $0x8] sm:$0xff]
    %v54 = vld [vmem:[%s2 + $0x10] sm:$0xff]
    %v55 = vld [vmem:[%s2 + $0x18] sm:$0xff]
    %v56 = vld [vmem:[%s3] sm:$0x1]
    %v58 = vlaneseq
    %v59 = vshrl.u32 %v58, 7
    %v60 = vsub.s32 0, %v59
    %v61 = vrot.slane %v56, %v60
    %vm63 = vcmask 261120
    %v65 = vsel %vm63, %v51, 0
    %67 = vmatprep.subr.mxu0 0.0
    %68 = vmatpush1.msra.mxu0 %v52
    %69 = vmatprep.subr.mxu0 0.0
    %70 = vmatpush1.msra.mxu0 %v53
    %71 = vmatprep.subr.mxu0 0.0
    %72 = vmatpush1.msra.mxu0 %v54
    %73 = vmatprep.subr.mxu0 0.0
    %74 = vmatpush1.msra.mxu0 %v55
    %75 = vmatprep.subr.mxu0 0.0
    %76 = vmatpush1.msra.mxu0 0.0
    %77 = vmatprep.subr.mxu0 0.0
    %78 = vmatpush1.msra.mxu0 0.0
    %79 = vmatprep.subr.mxu0 0.0
    %80 = vmatpush1.msra.mxu0 0.0
    %81 = vmatprep.subr.mxu0 0.0
    %82 = vmatpush1.msra.mxu0 0.0
    %83 = vmatprep.subr.mxu0 0.0
    %84 = vmatpush1.msra.mxu0 0.0
    %85 = vmatprep.subr.mxu0 0.0
    %86 = vmatpush1.msra.mxu0 0.0
    %87 = vmatprep.subr.mxu0 0.0
    %88 = vmatpush1.msra.mxu0 0.0
    %89 = vmatprep.subr.mxu0 0.0
    %90 = vmatpush1.msra.mxu0 0.0
    %91 = vmatprep.subr.mxu0 0.0
    %92 = vmatpush1.msra.mxu0 0.0
    %93 = vmatprep.subr.mxu0 0.0
    %94 = vmatpush1.msra.mxu0 0.0
    %95 = vmatprep.subr.mxu0 0.0
    %96 = vmatpush1.msra.mxu0 0.0
    %97 = vmatprep.subr.mxu0 0.0
    %98 = vmatpush1.msra.mxu0 0.0
    %99 = vmatprep.subr.mxu0 0.0
    %100 = vmatpush1.msra.mxu0 0.0
    %101 = vmatprep.subr.mxu0 0.0
    %102 = vmatpush1.msra.mxu0 0.0
    %103 = vmatprep.subr.mxu0 0.0
    %104 = vmatpush1.msra.mxu0 0.0
    %105 = vmatprep.subr.mxu0 0.0
    %106 = vmatpush1.msra.mxu0 0.0
    %107 = vmatprep.subr.mxu0 0.0
    %108 = vmatpush1.msra.mxu0 0.0
    %109 = vmatprep.subr.mxu0 0.0
    %110 = vmatpush1.msra.mxu0 0.0
    %111 = vmatprep.subr.mxu0 0.0
    %112 = vmatpush1.msra.mxu0 0.0
    %113 = vmatprep.subr.mxu0 0.0
    %114 = vmatpush1.msra.mxu0 0.0
    %115 = vmatprep.subr.mxu0 0.0
    %116 = vmatpush1.msra.mxu0 0.0
    %117 = vmatprep.subr.mxu0 0.0
    %118 = vmatpush1.msra.mxu0 0.0
    %119 = vmatprep.subr.mxu0 0.0
    %120 = vmatpush1.msra.mxu0 0.0
    %121 = vmatprep.subr.mxu0 0.0
    %122 = vmatpush1.msra.mxu0 0.0
    %123 = vmatprep.subr.mxu0 0.0
    %124 = vmatpush1.msra.mxu0 0.0
    %125 = vmatprep.subr.mxu0 0.0
    %126 = vmatpush1.msra.mxu0 0.0
    %127 = vmatprep.subr.mxu0 0.0
    %128 = vmatpush1.msra.mxu0 0.0
    %129 = vmatprep.subr.mxu0 0.0
    %130 = vmatpush1.msra.mxu0 0.0
    %131 = vmatprep.mubr.f32.mxu0 0.0
    %132 = vmatmul.mubr.f32.gmra.mrb[0].mxu0 %v65
    %v133 = vpop.f32.mrb[0].mxu0
    %v134 = vadd.f32 %v61, %v133
    %v135 = vpop.f32.mrb[0].mxu0
    %136 = vdwg.mxu0
    %v137 = vmax.f32 %v134, 0.0
    %v138 = vld [vmem:[#allocation2] sm:$0xff]
    %v139 = vld [vmem:[#allocation2 + $0x8] sm:$0xff]
    %v140 = vld [vmem:[#allocation2 + $0x10] sm:$0xff]
    %v141 = vld [vmem:[#allocation2 + $0x18] sm:$0xff]
    %v142 = vld [vmem:[%s5] sm:$0x1]
    %v144 = vlaneseq
    %v145 = vshrl.u32 %v144, 7
    %v146 = vsub.s32 0, %v145
    %v147 = vrot.slane %v142, %v146
    %v150 = vsel %vm63, %v137, 0
    %152 = vmatprep.subr.mxu0 0.0
    %153 = vmatpush1.msra.mxu0 %v138
    %154 = vmatprep.subr.mxu0 0.0
    %155 = vmatpush1.msra.mxu0 %v139
    %156 = vmatprep.subr.mxu0 0.0
    %157 = vmatpush1.msra.mxu0 %v140
    %158 = vmatprep.subr.mxu0 0.0
    %159 = vmatpush1.msra.mxu0 %v141
    %160 = vmatprep.subr.mxu0 0.0
    %161 = vmatpush1.msra.mxu0 0.0
    %162 = vmatprep.subr.mxu0 0.0
    %163 = vmatpush1.msra.mxu0 0.0
    %164 = vmatprep.subr.mxu0 0.0
    %165 = vmatpush1.msra.mxu0 0.0
    %166 = vmatprep.subr.mxu0 0.0
    %167 = vmatpush1.msra.mxu0 0.0
    %168 = vmatprep.subr.mxu0 0.0
    %169 = vmatpush1.msra.mxu0 0.0
    %170 = vmatprep.subr.mxu0 0.0
    %171 = vmatpush1.msra.mxu0 0.0
    %172 = vmatprep.subr.mxu0 0.0
    %173 = vmatpush1.msra.mxu0 0.0
    %174 = vmatprep.subr.mxu0 0.0
    %175 = vmatpush1.msra.mxu0 0.0
    %176 = vmatprep.subr.mxu0 0.0
    %177 = vmatpush1.msra.mxu0 0.0
    %178 = vmatprep.subr.mxu0 0.0
    %179 = vmatpush1.msra.mxu0 0.0
    %180 = vmatprep.subr.mxu0 0.0
    %181 = vmatpush1.msra.mxu0 0.0
    %182 = vmatprep.subr.mxu0 0.0
    %183 = vmatpush1.msra.mxu0 0.0
    %184 = vmatprep.subr.mxu0 0.0
    %185 = vmatpush1.msra.mxu0 0.0
    %186 = vmatprep.subr.mxu0 0.0
    %187 = vmatpush1.msra.mxu0 0.0
    %188 = vmatprep.subr.mxu0 0.0
    %189 = vmatpush1.msra.mxu0 0.0
    %190 = vmatprep.subr.mxu0 0.0
    %191 = vmatpush1.msra.mxu0 0.0
    %192 = vmatprep.subr.mxu0 0.0
    %193 = vmatpush1.msra.mxu0 0.0
    %194 = vmatprep.subr.mxu0 0.0
    %195 = vmatpush1.msra.mxu0 0.0
    %196 = vmatprep.subr.mxu0 0.0
    %197 = vmatpush1.msra.mxu0 0.0
    %198 = vmatprep.subr.mxu0 0.0
    %199 = vmatpush1.msra.mxu0 0.0
    %200 = vmatprep.subr.mxu0 0.0
    %201 = vmatpush1.msra.mxu0 0.0
    %202 = vmatprep.subr.mxu0 0.0
    %203 = vmatpush1.msra.mxu0 0.0
    %204 = vmatprep.subr.mxu0 0.0
    %205 = vmatpush1.msra.mxu0 0.0
    %206 = vmatprep.subr.mxu0 0.0
    %207 = vmatpush1.msra.mxu0 0.0
    %208 = vmatprep.subr.mxu0 0.0
    %209 = vmatpush1.msra.mxu0 0.0
    %210 = vmatprep.subr.mxu0 0.0
    %211 = vmatpush1.msra.mxu0 0.0
    %212 = vmatprep.subr.mxu0 0.0
    %213 = vmatpush1.msra.mxu0 0.0
    %214 = vmatprep.subr.mxu0 0.0
    %215 = vmatpush1.msra.mxu0 0.0
    %216 = vmatprep.mubr.f32.mxu0 0.0
    %217 = vmatmul.mubr.f32.gmra.mrb[0].mxu0 %v150
    %v218 = vpop.f32.mrb[0].mxu0
    %v219 = vadd.f32 %v147, %v218
    %v220 = vpop.f32.mrb[0].mxu0
    %221 = vdwg.mxu0
    %v222 = vmax.f32 %v219, 0.0
    %v223 = vld [vmem:[%s6] sm:$0xff]
    %v224 = vld [vmem:[%s6 + $0x8] sm:$0xff]
    %v225 = vld [vmem:[%s6 + $0x10] sm:$0xff]
    %v226 = vld [vmem:[%s6 + $0x18] sm:$0xff]
    %v227 = vld [vmem:[%s7] sm:$0x1]
    %v229 = vlaneseq
    %v230 = vshrl.u32 %v229, 7
    %v231 = vsub.s32 0, %v230
    %v232 = vrot.slane %v227, %v231
    %v235 = vsel %vm63, %v222, 0
    %237 = vmatprep.subr.mxu0 0.0
    %238 = vmatpush1.msra.mxu0 %v223
    %239 = vmatprep.subr.mxu0 0.0
    %240 = vmatpush1.msra.mxu0 %v224
    %241 = vmatprep.subr.mxu0 0.0
    %242 = vmatpush1.msra.mxu0 %v225
    %243 = vmatprep.subr.mxu0 0.0
    %244 = vmatpush1.msra.mxu0 %v226
    %245 = vmatprep.subr.mxu0 0.0
    %246 = vmatpush1.msra.mxu0 0.0
    %247 = vmatprep.subr.mxu0 0.0
    %248 = vmatpush1.msra.mxu0 0.0
    %249 = vmatprep.subr.mxu0 0.0
    %250 = vmatpush1.msra.mxu0 0.0
    %251 = vmatprep.subr.mxu0 0.0
    %252 = vmatpush1.msra.mxu0 0.0
    %253 = vmatprep.subr.mxu0 0.0
    %254 = vmatpush1.msra.mxu0 0.0
    %255 = vmatprep.subr.mxu0 0.0
    %256 = vmatpush1.msra.mxu0 0.0
    %257 = vmatprep.subr.mxu0 0.0
    %258 = vmatpush1.msra.mxu0 0.0
    %259 = vmatprep.subr.mxu0 0.0
    %260 = vmatpush1.msra.mxu0 0.0
    %261 = vmatprep.subr.mxu0 0.0
    %262 = vmatpush1.msra.mxu0 0.0
    %263 = vmatprep.subr.mxu0 0.0
    %264 = vmatpush1.msra.mxu0 0.0
    %265 = vmatprep.subr.mxu0 0.0
    %266 = vmatpush1.msra.mxu0 0.0
    %267 = vmatprep.subr.mxu0 0.0
    %268 = vmatpush1.msra.mxu0 0.0
    %269 = vmatprep.subr.mxu0 0.0
    %270 = vmatpush1.msra.mxu0 0.0
    %271 = vmatprep.subr.mxu0 0.0
    %272 = vmatpush1.msra.mxu0 0.0
    %273 = vmatprep.subr.mxu0 0.0
    %274 = vmatpush1.msra.mxu0 0.0
    %275 = vmatprep.subr.mxu0 0.0
    %276 = vmatpush1.msra.mxu0 0.0
    %277 = vmatprep.subr.mxu0 0.0
    %278 = vmatpush1.msra.mxu0 0.0
    %279 = vmatprep.subr.mxu0 0.0
    %280 = vmatpush1.msra.mxu0 0.0
    %281 = vmatprep.subr.mxu0 0.0
    %282 = vmatpush1.msra.mxu0 0.0
    %283 = vmatprep.subr.mxu0 0.0
    %284 = vmatpush1.msra.mxu0 0.0
    %285 = vmatprep.subr.mxu0 0.0
    %286 = vmatpush1.msra.mxu0 0.0
    %287 = vmatprep.subr.mxu0 0.0
    %288 = vmatpush1.msra.mxu0 0.0
    %289 = vmatprep.subr.mxu0 0.0
    %290 = vmatpush1.msra.mxu0 0.0
    %291 = vmatprep.subr.mxu0 0.0
    %292 = vmatpush1.msra.mxu0 0.0
    %293 = vmatprep.subr.mxu0 0.0
    %294 = vmatpush1.msra.mxu0 0.0
    %295 = vmatprep.subr.mxu0 0.0
    %296 = vmatpush1.msra.mxu0 0.0
    %297 = vmatprep.subr.mxu0 0.0
    %298 = vmatpush1.msra.mxu0 0.0
    %299 = vmatprep.subr.mxu0 0.0
    %300 = vmatpush1.msra.mxu0 0.0
    %301 = vmatprep.mubr.f32.mxu0 0.0
    %302 = vmatmul.mubr.f32.gmra.mrb[0].mxu0 %v235
    %v303 = vpop.f32.mrb[0].mxu0
    %v304 = vadd.f32 %v232, %v303
    %v305 = vpop.f32.mrb[0].mxu0
    %306 = vdwg.mxu0
    %vm307 = vcmask 58368
    %308 = vst.msk [vmem:[#allocation5] sm:$0x3] %vm307, %v304
    // Predicated region
    $region38: #{inverse_dynamics_head.1} parent=1 // pred_check
      _
    $region39: #{inverse_dynamics_head.1} parent=1 // pred_check_branch
      %310 = sbr.rel (0) target = $region41
    $region40: #{inverse_dynamics_head.1} parent=1 // pred_region
      %s312 = ssub.s32 32, 32
      %313 = vsyncadd [#allocation4], %s312
      %s315 = sshll.u32 [#allocation5], 4
      %s316 = int_to_ptr.vmem [resolvable:$true] %s315
      %318 = dma.vmem_to_hbm [thread:$0]  %s316, 32, %s8, [#allocation4]
    $region41: #{inverse_dynamics_head.1} parent=1 // pred_fallthru
      _
    // Predicated region
    $region42: #{inverse_dynamics_head.1} parent=1 // pred_check
      _
    $region43: #{inverse_dynamics_head.1} parent=1 // pred_check_branch
      %320 = sbr.rel (0) target = $region45
    $region44: #{inverse_dynamics_head.1} parent=1 // pred_region
      %321 = dma.done [#allocation4], 32
    $region45: #{inverse_dynamics_head.1} parent=1 // pred_fallthru
      _
    %322 = vsyncpa [#allocation3], 1
    %323 = vsyncpa [#allocation4], 1

</llo_original>
